<compile_context>
chip_gen: v5e
topology: v5e:2x2
jax: 0.10.0
libtpu: 0.0.40
codegen_flags: <defaults>
</compile_context>

<pallas_src>
import jax
import jax.numpy as jnp
from jax import lax
from jax.experimental import pallas as pl
from jax.experimental.pallas import tpu as pltpu

NEG_SLOPE = 0.01       # PyTorch nn.LeakyReLU() default negative_slope
LANE = 128
SUBLANE = 16           # keep M tiles 16-aligned (safe for bf16/f32 packing)


def _round_up(x, m):
    return ((x + m - 1) // m) * m


def _vmem_budget_bytes():
    """Per-core VMEM budget with ~25% headroom; conservative 64 MiB fallback."""
    try:
        cap = int(pltpu.get_tpu_info().vmem_capacity_bytes)
    except Exception:
        cap = 64 * 1024 * 1024          # v7x per-TensorCore physical VMEM
    return (cap * 3) // 4


def _tile_footprint(tm, tn, tk, Dp, x_item, w_item):
    """Double-buffered inputs/outputs + f32 accumulator (if K is not collapsed)."""
    lhs = 2 * tm * tk * x_item
    wgt = 2 * tk * tn * w_item
    bias = 2 * tn * 4
    res = 0 if (tk == Dp and tn == Dp) else 2 * tm * tn * x_item
    out = 2 * tm * tn * x_item
    acc = tm * tn * 4 if tk < Dp else 0
    return lhs + wgt + bias + res + out + acc


def _choose_tiles(B, Dp, x_item, w_item, budget, max_tile_k=None):
    divs = [c for c in (2048, 1024, 512, 256, 128) if Dp % c == 0]
    tn_opts = [c for c in divs if c <= 1024]
    tn_i, tn = 0, tn_opts[0]
    tm = min(512, _round_up(B, SUBLANE))
    tk_opts = [Dp] + [c for c in divs if c < Dp]
    if max_tile_k is not None:
        tk_opts = [c for c in tk_opts if c <= max_tile_k] or [divs[-1]]
    tk_i, tk = 0, tk_opts[0]

    # Greedy shrink until the footprint fits: tk first (cheapest to lose),
    # then tm, then tn.
    while _tile_footprint(tm, tn, tk, Dp, x_item, w_item) > budget:
        if tk_i + 1 < len(tk_opts):
            tk_i += 1
            tk = tk_opts[tk_i]
        elif tm > SUBLANE:
            tm = max(SUBLANE, _round_up(tm // 2, SUBLANE))
        elif tn_i + 1 < len(tn_opts):
            tn_i += 1
            tn = tn_opts[tn_i]
        else:
            break

    # Guarantee >= 2 blocks on a parallel axis for non-trivial problems so
    # both v7x TensorCores get work (harmless elsewhere).
    m_blocks = _round_up(B, tm) // tm
    n_blocks = Dp // tn
    if m_blocks * n_blocks == 1 and Dp >= 512:
        smaller = [c for c in tn_opts if c < tn]
        if smaller:
            tn = smaller[0]
    return tm, tn, tk


# ----------------------------- kernels --------------------------------------

def _kernel_fused(x_ref, w_ref, b_ref, o_ref):
    """tn == tk == Dp: single pass, one x tile is both LHS and residual."""
    xl = x_ref[...]
    y = lax.dot_general(xl.astype(w_ref.dtype), w_ref[...],
                        dimension_numbers=(((1,), (0,)), ((), ())),
                        preferred_element_type=jnp.float32)
    y = y + b_ref[...].astype(jnp.float32)
    y = jnp.where(y >= 0, y, NEG_SLOPE * y)
    y = y + xl.astype(jnp.float32)
    o_ref[...] = y.astype(o_ref.dtype)


def _kernel_single_k(x_ref, w_ref, b_ref, xres_ref, o_ref):
    """K collapsed to one step (tk == Dp); grid = (M, N); no accumulator."""
    y = lax.dot_general(x_ref[...].astype(w_ref.dtype), w_ref[...],
                        dimension_numbers=(((1,), (0,)), ((), ())),
                        preferred_element_type=jnp.float32)
    y = y + b_ref[...].astype(jnp.float32)
    y = jnp.where(y >= 0, y, NEG_SLOPE * y)
    y = y + xres_ref[...].astype(jnp.float32)
    o_ref[...] = y.astype(o_ref.dtype)


def _kernel_acc(x_ref, w_ref, b_ref, xres_ref, o_ref, acc_ref):
    """Grid = (M, N, K), K innermost; f32 VMEM accumulator."""
    k = pl.program_id(2)

    @pl.when(k == 0)
    def _init():
        acc_ref[...] = jnp.zeros_like(acc_ref)

    acc_ref[...] += lax.dot_general(
        x_ref[...].astype(w_ref.dtype), w_ref[...],
        dimension_numbers=(((1,), (0,)), ((), ())),
        preferred_element_type=jnp.float32)

    @pl.when(k == pl.num_programs(2) - 1)
    def _finalize():
        y = acc_ref[...] + b_ref[...].astype(jnp.float32)
        y = jnp.where(y >= 0, y, NEG_SLOPE * y)
        y = y + xres_ref[...].astype(jnp.float32)
        o_ref[...] = y.astype(o_ref.dtype)


# ----------------------------- wrappers -------------------------------------

def prepare_residual_fc_params(weight, bias, *, compute_dtype=jnp.bfloat16):
    """One-time ("load time") parameter prep — keep this out of the hot path.

    weight: (out_features, in_features) PyTorch nn.Linear layout; the residual
            add requires out_features == in_features == D.
    Returns (w_kn, b_row, D):
      w_kn : (Dp, Dp) weight padded to a 128 multiple, transposed to
             (in=K, out=N) and cast to `compute_dtype` (canonical MXU feed).
      b_row: (1, Dp) f32 bias.
    """
    Dout, Din = weight.shape
    assert Dout == Din, "Residual_fc requires v_output == v_input"
    D = Din
    Dp = _round_up(D, LANE)
    w = weight
    b = bias.astype(jnp.float32)
    if Dp != D:
        w = jnp.pad(w, ((0, Dp - D), (0, Dp - D)))
        b = jnp.pad(b, (0, Dp - D))
    w_kn = jnp.transpose(w).astype(compute_dtype)   # (in=K, out=N)
    return w_kn, b.reshape(1, Dp), D


def residual_fc(x, w_kn, b_row, *, max_tile_k=None):
    """Forward of Residual_fc: LeakyReLU(x @ W.T + b) + x.

    x     : (B, D) activations (any float dtype; cast to bf16 inside kernel).
    w_kn  : (Dp, Dp) prepared weight from prepare_residual_fc_params.
    b_row : (1, Dp) prepared bias.
    """
    B, D = x.shape
    Dp, Dp2 = w_kn.shape
    assert Dp == Dp2 and D <= Dp, "weight not prepared for this input width"

    budget = _vmem_budget_bytes()
    x_item = jnp.dtype(x.dtype).itemsize
    w_item = jnp.dtype(w_kn.dtype).itemsize
    tm, tn, tk = _choose_tiles(B, Dp, x_item, w_item, budget, max_tile_k)

    Bp = _round_up(B, tm)
    x_p = x if (Bp == B and Dp == D) else jnp.pad(x, ((0, Bp - B), (0, Dp - D)))

    m_blocks = Bp // tm
    n_blocks = Dp // tn
    k_blocks = Dp // tk

    fp = _tile_footprint(tm, tn, tk, Dp, x_item, w_item)
    vmem_limit = int(min(budget, max(fp + fp // 4, 32 * 1024 * 1024)))
    out_shape = jax.ShapeDtypeStruct((Bp, Dp), x.dtype)

    if k_blocks == 1 and tn == Dp:
        out_p = pl.pallas_call(
            _kernel_fused,
            out_shape=out_shape,
            grid_spec=pltpu.PrefetchScalarGridSpec(
                num_scalar_prefetch=0,
                grid=(m_blocks,),
                in_specs=[
                    pl.BlockSpec((tm, Dp), lambda i: (i, 0)),    # x (LHS + residual)
                    pl.BlockSpec((Dp, Dp), lambda i: (0, 0)),    # W (in, out)
                    pl.BlockSpec((1, Dp), lambda i: (0, 0)),     # bias
                ],
                out_specs=pl.BlockSpec((tm, Dp), lambda i: (i, 0)),
            ),
            compiler_params=pltpu.CompilerParams(
                dimension_semantics=("parallel",),
                vmem_limit_bytes=vmem_limit,
            ),
        )(x_p, w_kn, b_row)
    elif k_blocks == 1:
        out_p = pl.pallas_call(
            _kernel_single_k,
            out_shape=out_shape,
            grid_spec=pltpu.PrefetchScalarGridSpec(
                num_scalar_prefetch=0,
                grid=(m_blocks, n_blocks),
                in_specs=[
                    pl.BlockSpec((tm, Dp), lambda i, j: (i, 0)),   # x (LHS, full K row)
                    pl.BlockSpec((Dp, tn), lambda i, j: (0, j)),   # W (in, out)
                    pl.BlockSpec((1, tn), lambda i, j: (0, j)),    # bias
                    pl.BlockSpec((tm, tn), lambda i, j: (i, j)),   # x (residual)
                ],
                out_specs=pl.BlockSpec((tm, tn), lambda i, j: (i, j)),
            ),
            compiler_params=pltpu.CompilerParams(
                dimension_semantics=("parallel", "parallel"),
                vmem_limit_bytes=vmem_limit,
            ),
        )(x_p, w_kn, b_row, x_p)
    else:
        out_p = pl.pallas_call(
            _kernel_acc,
            out_shape=out_shape,
            grid_spec=pltpu.PrefetchScalarGridSpec(
                num_scalar_prefetch=0,
                grid=(m_blocks, n_blocks, k_blocks),
                in_specs=[
                    pl.BlockSpec((tm, tk), lambda i, j, k: (i, k)),   # x (LHS)
                    pl.BlockSpec((tk, tn), lambda i, j, k: (k, j)),   # W (in, out)
                    pl.BlockSpec((1, tn), lambda i, j, k: (0, j)),    # bias
                    pl.BlockSpec((tm, tn), lambda i, j, k: (i, j)),   # x (residual)
                ],
                out_specs=pl.BlockSpec((tm, tn), lambda i, j, k: (i, j)),
                scratch_shapes=[pltpu.VMEM((tm, tn), jnp.float32)],
            ),
            compiler_params=pltpu.CompilerParams(
                dimension_semantics=("parallel", "parallel", "arbitrary"),
                vmem_limit_bytes=vmem_limit,
            ),
        )(x_p, w_kn, b_row, x_p)

    if Bp != B or Dp != D:
        out_p = out_p[:B, :D]
    return out_p


def _reference(x, weight, bias, compute_dtype=jnp.bfloat16):
    """Plain-JAX reference matching the kernel's bf16-operand / f32-accum math."""
    xc = x.astype(compute_dtype).astype(jnp.float32)
    wc = weight.astype(compute_dtype).astype(jnp.float32)
    y = xc @ wc.T + bias.astype(jnp.float32)
    y = jnp.where(y >= 0, y, NEG_SLOPE * y)
    return (y + x.astype(jnp.float32)).astype(x.dtype)


if __name__ == "__main__":
    key = jax.random.PRNGKey(0)

    def make_inputs(k, batch, hidden):
        k_x, k_w, k_b = jax.random.split(k, 3)
        bound = 1.0 / (hidden ** 0.5)
        x = jax.random.normal(k_x, (batch, hidden), dtype=jnp.float32)
        # PyTorch nn.Linear weight layout: (out_features, in_features)
        w = jax.random.uniform(k_w, (hidden, hidden), jnp.float32, -bound, bound)
        b = jax.random.uniform(k_b, (hidden,), jnp.float32, -bound, bound)
        return x, w, b

    k1, k2, k3 = jax.random.split(key, 3)

    # Test 1: module-sized small shapes (D=32 -> Dp=128, fused single-tile path).
    x1, w1, b1 = make_inputs(k1, batch=8, hidden=32)
    w1p, b1p, _ = prepare_residual_fc_params(w1, b1)      # one-time "load time" prep
    out1 = residual_fc(x1, w1p, b1p)
    jax.block_until_ready(out1)
    assert out1.shape == (8, 32)
    assert jnp.allclose(out1, _reference(x1, w1, b1), atol=2e-3, rtol=2e-3), \
        "mismatch at (8, 32)"

    # Test 2: D=1024 -> collapsed-K path with an N split (grid (1, 2)).
    x2, w2, b2 = make_inputs(k2, batch=40, hidden=1024)
    w2p, b2p, _ = prepare_residual_fc_params(w2, b2)
    out2 = residual_fc(x2, w2p, b2p)
    jax.block_until_ready(out2)
    assert out2.shape == (40, 1024)
    assert jnp.allclose(out2, _reference(x2, w2, b2), atol=2e-3, rtol=2e-3), \
        "mismatch at (40, 1024)"

    # Test 3: force tk=512 to exercise the K-reduction accumulator path.
    out3 = residual_fc(x2, w2p, b2p, max_tile_k=512)
    jax.block_until_ready(out3)
    assert jnp.allclose(out3, _reference(x2, w2, b2), atol=2e-3, rtol=2e-3), \
        "mismatch on accumulator path (40, 1024)"

    # Test 4: odd hidden size to exercise the 128-lane padding path.
    x4, w4, b4 = make_inputs(k3, batch=10, hidden=200)
    w4p, b4p, _ = prepare_residual_fc_params(w4, b4)
    out4 = residual_fc(x4, w4p, b4p)
    jax.block_until_ready(out4)
    assert out4.shape == (10, 200)
    assert jnp.allclose(out4, _reference(x4, w4, b4), atol=2e-3, rtol=2e-3), \
        "mismatch at (10, 200)"

    print("KERNEL_OK")
</pallas_src>

<mosaic_0001>
module attributes {stable_mosaic.version = 11 : i64} {
  func.func @_kernel_fused(%arg0: i32, %arg1: memref<16x128xf32, #tpu.memory_space<vmem>>, %arg2: memref<128x128xbf16, #tpu.memory_space<vmem>>, %arg3: memref<1x128xf32, #tpu.memory_space<vmem>>, %arg4: memref<16x128xf32, #tpu.memory_space<vmem>>) attributes {dimension_semantics = [#tpu.dimension_semantics<parallel>], iteration_bounds = array<i64: 1>, scalar_prefetch = 0 : i64, scratch_operands = 0 : i64, tpu.core_type = #tpu.core_type<tc>, window_params = [{transform_indices = @transform_0, window_bounds = array<i64: 16, 128>}, {pipeline_mode = #tpu.pipeline_mode<synchronous>, transform_indices = @transform_1, window_bounds = array<i64: 128, 128>}, {pipeline_mode = #tpu.pipeline_mode<synchronous>, transform_indices = @transform_2, window_bounds = array<i64: 1, 128>}, {transform_indices = @transform_3, window_bounds = array<i64: 16, 128>}]} {
    %c0 = arith.constant 0 : index
    %c0_0 = arith.constant 0 : index
    %0 = vector.load %arg1[%c0, %c0_0] : memref<16x128xf32, #tpu.memory_space<vmem>>, vector<16x128xf32>
    %1 = arith.truncf %0 : vector<16x128xf32> to vector<16x128xbf16>
    %c0_1 = arith.constant 0 : index
    %c0_2 = arith.constant 0 : index
    %2 = vector.load %arg2[%c0_1, %c0_2] : memref<128x128xbf16, #tpu.memory_space<vmem>>, vector<128x128xbf16>
    %cst = arith.constant dense<0.000000e+00> : vector<16x128xf32>
    %3 = tpu.matmul %1, %2, %cst {dimension_numbers = #tpu.dot_dimension_numbers<[1], [0], [0], [1], [0, 0, 1, 1], [], []>} : vector<16x128xbf16>, vector<128x128xbf16>, vector<16x128xf32> -> vector<16x128xf32>
    %c0_3 = arith.constant 0 : index
    %c0_4 = arith.constant 0 : index
    %4 = vector.load %arg3[%c0_3, %c0_4] : memref<1x128xf32, #tpu.memory_space<vmem>>, vector<1x128xf32>
    %5 = vector.broadcast %4 : vector<1x128xf32> to vector<16x128xf32>
    %6 = arith.addf %3, %5 : vector<16x128xf32>
    %cst_5 = arith.constant 0.000000e+00 : f32
    %7 = vector.broadcast %cst_5 : f32 to vector<16x128xf32>
    %8 = arith.cmpf oge, %6, %7 : vector<16x128xf32>
    %cst_6 = arith.constant 0.00999999977 : f32
    %9 = vector.broadcast %cst_6 : f32 to vector<16x128xf32>
    %10 = arith.mulf %9, %6 : vector<16x128xf32>
    %11 = arith.select %8, %6, %10 : vector<16x128xi1>, vector<16x128xf32>
    %12 = arith.addf %11, %0 : vector<16x128xf32>
    %c0_7 = arith.constant 0 : index
    %c0_8 = arith.constant 0 : index
    %13 = vector.load %arg4[%c0_7, %c0_8] : memref<16x128xf32, #tpu.memory_space<vmem>>, vector<16x128xf32>
    tpu.vector_store %arg4[%c0_7, %c0_8], %12 {strides = array<i32>} : memref<16x128xf32, #tpu.memory_space<vmem>>, vector<16x128xf32>,
    return
  }
  func.func @transform_0(%arg0: i32) -> (i32, i32) {
    %c0_i32 = arith.constant 0 : i32
    %c0_i32_0 = arith.constant 0 : i32
    return %arg0, %c0_i32 : i32, i32
  }
  func.func @transform_1(%arg0: i32) -> (i32, i32) {
    %c0_i32 = arith.constant 0 : i32
    %c0_i32_0 = arith.constant 0 : i32
    %c0_i32_1 = arith.constant 0 : i32
    return %c0_i32, %c0_i32_0 : i32, i32
  }
  func.func @transform_2(%arg0: i32) -> (i32, i32) {
    %c0_i32 = arith.constant 0 : i32
    %c0_i32_0 = arith.constant 0 : i32
    %c0_i32_1 = arith.constant 0 : i32
    return %c0_i32, %c0_i32_0 : i32, i32
  }
  func.func @transform_3(%arg0: i32) -> (i32, i32) {
    %c0_i32 = arith.constant 0 : i32
    %c0_i32_0 = arith.constant 0 : i32
    return %arg0, %c0_i32 : i32, i32
  }
}

</mosaic_0001>

<llo_original>
// kernel: tpu_custom_call.1
$region0: #{tpu_custom_call.1}
  #allocation0 [shape = 'u32[]', space=smem, size = 0x4, offset = 0x4, fixed_abs, tag = 'smem constant byte address 0x4 - core index']
  #allocation1 [shape = 'u32[72,128]{1,0:T(1,128)}', space=vmem, size = 0x9000, scoped, tag = 'internal scratch']
  %s0 = inlined_call_operand.hbm [shape: f32[16,128], index: 0, kind: input, shape index: {}]
  %s1 = inlined_call_operand.hbm [shape: bf16[128,128], index: 1, kind: input, shape index: {}]
  %s2 = inlined_call_operand.vmem [shape: f32[1,128], index: 2, kind: input, shape index: {}]
  %s3 = inlined_call_operand.hbm [shape: f32[16,128], index: 3, kind: output, shape index: {}]
  %s4 = sld [smem:[#allocation0]]
  $region30: #{tpu_custom_call.1} parent=0
    _
  %s6 = ssub.s32 1, %s4
  %s7 = scalar_select 0, %s6, %s4
  $region1: #{tpu_custom_call.1} parent=0
    #allocation2 [shape = 'u8[8192]{0}', space=vmem, size = 0x2000, scoped, tag = 'input window, operand 0, single buffered']
    #allocation3 [shape = 's32[1]{0}', space=sflag, size = 0x4, scoped, tag = 'scoped memory for tpu_custom_call.1']
    #allocation4 [shape = 's32[1]{0}', space=sflag, size = 0x4, scoped, tag = 'scoped memory for tpu_custom_call.1']
    #allocation5 [shape = 'u8[32768]{0}', space=vmem, size = 0x8000, scoped, tag = 'input window, operand 1, single buffered']
    #allocation6 [shape = 's32[1]{0}', space=sflag, size = 0x4, scoped, tag = 'scoped memory for tpu_custom_call.1']
    #allocation7 [shape = 'u8[8192]{0}', space=vmem, size = 0x2000, scoped, tag = 'output window, operand 0, single buffered']
    %8 = vsyncpa [#allocation3], 0
    %9 = vsyncpa [#allocation6], 0
    %10 = vsyncpa [#allocation4], 0
    // Predicated region
    $region2: #{tpu_custom_call.1} parent=1 // pred_check
      _
    $region3: #{tpu_custom_call.1} parent=1 // pred_check_branch
      %12 = sbr.rel (0) target = $region5
    $region4: #{tpu_custom_call.1} parent=1 // pred_region
      %14 = vsyncadd [#allocation3], 0
      %s15 = sshll.u32 %s0, 4
      %s16 = int_to_ptr.hbm [resolvable:$true] %s15
      %s17 = sshll.u32 [#allocation2], 4
      %s18 = int_to_ptr.vmem [resolvable:$true] %s17
      %23 = dma.hbm_to_vmem [thread:$0]  %s16, 256, %s18, [#allocation3], 128, 128, 8
    $region5: #{tpu_custom_call.1} parent=1 // pred_fallthru
      _
    // Predicated region
    $region6: #{tpu_custom_call.1} parent=1 // pred_check
      _
    $region7: #{tpu_custom_call.1} parent=1 // pred_check_branch
      %25 = sbr.rel (0) target = $region9
    $region8: #{tpu_custom_call.1} parent=1 // pred_region
      %27 = vsyncadd [#allocation6], 0
      %s28 = sshll.u32 %s1, 4
      %s29 = int_to_ptr.hbm [resolvable:$true] %s28
      %s30 = sshll.u32 [#allocation5], 4
      %s31 = int_to_ptr.vmem [resolvable:$true] %s30
      %36 = dma.hbm_to_vmem [thread:$0]  %s29, 1024, %s31, [#allocation6], 64, 64, 4
    $region9: #{tpu_custom_call.1} parent=1 // pred_fallthru
      _
    // Predicated region
    $region10: #{tpu_custom_call.1} parent=1 // pred_check
      _
    $region11: #{tpu_custom_call.1} parent=1 // pred_check_branch
      %38 = sbr.rel (0) target = $region13
    $region12: #{tpu_custom_call.1} parent=1 // pred_region
      _
    $region13: #{tpu_custom_call.1} parent=1 // pred_fallthru
      _
    // Predicated region
    $region14: #{tpu_custom_call.1} parent=1 // pred_check
      _
    $region15: #{tpu_custom_call.1} parent=1 // pred_check_branch
      %40 = sbr.rel (0) target = $region17
    $region16: #{tpu_custom_call.1} parent=1 // pred_region
      %42 = dma.done [#allocation3], 256
    $region17: #{tpu_custom_call.1} parent=1 // pred_fallthru
      _
    // Predicated region
    $region18: #{tpu_custom_call.1} parent=1 // pred_check
      _
    $region19: #{tpu_custom_call.1} parent=1 // pred_check_branch
      %44 = sbr.rel (0) target = $region21
    $region20: #{tpu_custom_call.1} parent=1 // pred_region
      %46 = dma.done [#allocation6], 1024
    $region21: #{tpu_custom_call.1} parent=1 // pred_fallthru
      _
    %v47 = vld [vmem:[#allocation2] sm:$0xff]
    %v48 = vld [vmem:[#allocation2 + $0x8] sm:$0xff]
    %v49 = vpack.c.bf16 %v48, %v47
    %v50 = vld [vmem:[#allocation5] sm:$0xf]
    %v51 = vld [vmem:[#allocation5 + $0x4] sm:$0xf]
    %v52 = vld [vmem:[#allocation5 + $0x8] sm:$0xf]
    %v53 = vld [vmem:[#allocation5 + $0xc] sm:$0xf]
    %v54 = vld [vmem:[#allocation5 + $0x10] sm:$0xf]
    %v55 = vld [vmem:[#allocation5 + $0x14] sm:$0xf]
    %v56 = vld [vmem:[#allocation5 + $0x18] sm:$0xf]
    %v57 = vld [vmem:[#allocation5 + $0x1c] sm:$0xf]
    %v58 = vld [vmem:[#allocation5 + $0x20] sm:$0xf]
    %v59 = vld [vmem:[#allocation5 + $0x24] sm:$0xf]
    %v60 = vld [vmem:[#allocation5 + $0x28] sm:$0xf]
    %v61 = vld [vmem:[#allocation5 + $0x2c] sm:$0xf]
    %v62 = vld [vmem:[#allocation5 + $0x30] sm:$0xf]
    %v63 = vld [vmem:[#allocation5 + $0x34] sm:$0xf]
    %v64 = vld [vmem:[#allocation5 + $0x38] sm:$0xf]
    %v65 = vld [vmem:[#allocation5 + $0x3c] sm:$0xf]
    %v66 = vld [vmem:[%s2] sm:$0x1]
    %v68 = vperm.slane %v66, 0
    %v86 = vunpack.c.l.b16 %v50
    %v87 = vunpack.c.l.b16 %v51
    %v88 = vunpack.c.l.b16 %v52
    %v89 = vunpack.c.l.b16 %v53
    %v90 = vunpack.c.l.b16 %v54
    %v91 = vunpack.c.l.b16 %v55
    %v92 = vunpack.c.l.b16 %v56
    %v93 = vunpack.c.l.b16 %v57
    %v94 = vunpack.c.l.b16 %v58
    %v95 = vunpack.c.l.b16 %v59
    %v96 = vunpack.c.l.b16 %v60
    %v97 = vunpack.c.l.b16 %v61
    %v98 = vunpack.c.l.b16 %v62
    %v99 = vunpack.c.l.b16 %v63
    %v100 = vunpack.c.l.b16 %v64
    %v101 = vunpack.c.l.b16 %v65
    %v102 = vpack.c.b16 %v87, %v86
    %v103 = vpack.c.b16 %v89, %v88
    %v104 = vpack.c.b16 %v91, %v90
    %v105 = vpack.c.b16 %v93, %v92
    %v106 = vpack.c.b16 %v95, %v94
    %v107 = vpack.c.b16 %v97, %v96
    %v108 = vpack.c.b16 %v99, %v98
    %v109 = vpack.c.b16 %v101, %v100
    %118 = vmatpush.bf16.msra.mxu0 %v109
    %119 = vmatpush.bf16.msra.mxu0 %v108
    %120 = vmatpush.bf16.msra.mxu0 %v107
    %121 = vmatpush.bf16.msra.mxu0 %v106
    %122 = vmatpush.bf16.msra.mxu0 %v105
    %123 = vmatpush.bf16.msra.mxu0 %v104
    %124 = vmatpush.bf16.msra.mxu0 %v103
    %125 = vmatpush.bf16.msra.mxu0 %v102
    %126 = vmatmul.bf16.gmra.mxu0 %v49
    %v127 = vpop.f32.mrf.mxu0
    %v128 = vadd.f32 %v68, %v127
    %v129 = vpop.f32.mrf.mxu0
    %v130 = vadd.f32 %v68, %v129
    %131 = vdwg.mxu0
    %vm132 = vcmp.ge.f32.partialorder %v128, 0.0
    %vm133 = vcmp.ge.f32.partialorder %v130, 0.0
    %v134 = vmul.f32 %v128, 0.01
    %v135 = vmul.f32 %v130, 0.01
    %v136 = vsel %vm132, %v128, %v134
    %v137 = vsel %vm133, %v130, %v135
    %v138 = vadd.f32 %v136, %v47
    %v139 = vadd.f32 %v137, %v48
    %140 = vst [vmem:[#allocation7] sm:$0xff] %v138
    %141 = vst [vmem:[#allocation7 + $0x8] sm:$0xff] %v139
    // Predicated region
    $region22: #{tpu_custom_call.1} parent=1 // pred_check
      _
    $region23: #{tpu_custom_call.1} parent=1 // pred_check_branch
      %143 = sbr.rel (0) target = $region25
    $region24: #{tpu_custom_call.1} parent=1 // pred_region
      %145 = vsyncadd [#allocation4], 0
      %s146 = sshll.u32 [#allocation7], 4
      %s147 = int_to_ptr.vmem [resolvable:$true] %s146
      %s148 = sshll.u32 %s3, 4
      %s149 = int_to_ptr.hbm [resolvable:$true] %s148
      %154 = dma.vmem_to_hbm [thread:$0]  %s147, 256, %s149, [#allocation4], 128, 128, 8
    $region25: #{tpu_custom_call.1} parent=1 // pred_fallthru
      _
    // Predicated region
    $region26: #{tpu_custom_call.1} parent=1 // pred_check
      _
    $region27: #{tpu_custom_call.1} parent=1 // pred_check_branch
      %156 = sbr.rel (0) target = $region29
    $region28: #{tpu_custom_call.1} parent=1 // pred_region
      %158 = dma.done [#allocation4], 256
    $region29: #{tpu_custom_call.1} parent=1 // pred_fallthru
      _
    %159 = vsyncpa [#allocation3], 1
    %160 = vsyncpa [#allocation6], 1
    %161 = vsyncpa [#allocation4], 1

</llo_original>
